<compile_context>
chip_gen: v5e
topology: v5e:2x2
jax: 0.10.0
libtpu: 0.0.40
codegen_flags: <defaults>
</compile_context>

<pallas_src>
import functools

import jax
import jax.numpy as jnp
from jax.experimental import pallas as pl
from jax.experimental.pallas import tpu as pltpu

HIDDEN = 16     # hidden_size of the LSTM (module default)
SEQ = 8         # sequence length of the example input
LANES = 128


def _pack_params(w_ih, w_hh, b_ih, b_hh, fc_w, fc_b):
    """One-time parameter prep: transpose / cast / gate-scale fold / pack.

    Slab layout ((rows, 128) f32, H = hidden, G = 4H, PyTorch gate order i,f,g,o):
      [0:H,   0:G  ]  W_hh^T  (i/f/o columns pre-scaled by 0.5)
      [H,     0:G  ]  W_ih^T  (same column scaling)
      [H+1,   0:G  ]  b_ih + b_hh (same column scaling)
      [H+2,   0:G  ]  activation scale row (0.5 on i/f/o lanes, 1.0 on g lanes)
      [H+3,   0:G  ]  activation offset row (0.5 on i/f/o lanes, 0.0 on g lanes)
      [0:H,   G:G+3]  fc.weight^T
      [H,     G:G+3]  fc.bias
    """
    H = w_hh.shape[1]
    G = 4 * H
    assert G + 3 <= LANES, "gate width must fit a single lane tile"

    ifo = jnp.concatenate(
        [jnp.ones((2 * H,)), jnp.zeros((H,)), jnp.ones((H,))]).astype(jnp.float32)
    col_scale = jnp.where(ifo > 0, 0.5, 1.0)     # fold 0.5 into i/f/o pre-activations
    act_scale = jnp.where(ifo > 0, 0.5, 1.0)     # sigmoid(x) = 0.5*tanh(x/2) + 0.5
    act_off = jnp.where(ifo > 0, 0.5, 0.0)

    w_hh_t = w_hh.T.astype(jnp.float32) * col_scale[None, :]                 # (H, G)
    w_ih_t = w_ih.reshape(1, G).astype(jnp.float32) * col_scale[None, :]     # (1, G)
    bias = ((b_ih + b_hh).astype(jnp.float32) * col_scale).reshape(1, G)     # (1, G)
    fc_w_t = fc_w.T.astype(jnp.float32)                                      # (H, 3)
    fc_b_r = fc_b.reshape(1, 3).astype(jnp.float32)                          # (1, 3)

    rows = pl.cdiv(H + 4, 8) * 8
    P = jnp.zeros((rows, LANES), jnp.float32)
    P = P.at[0:H, 0:G].set(w_hh_t)
    P = P.at[H:H + 1, 0:G].set(w_ih_t)
    P = P.at[H + 1:H + 2, 0:G].set(bias)
    P = P.at[H + 2:H + 3, 0:G].set(act_scale.reshape(1, G))
    P = P.at[H + 3:H + 4, 0:G].set(act_off.reshape(1, G))
    P = P.at[0:H, G:G + 3].set(fc_w_t)
    P = P.at[H:H + 1, G:G + 3].set(fc_b_r)
    return P


def _lstm_lppls_kernel(params_ref, t_ref, out_ref, *, H, seq):
    G = 4 * H
    # Static window loads from the packed parameter slab (one-time prologue).
    w_hh = params_ref[0:H, 0:G]              # (H, 4H), i/f/o cols pre-scaled by 0.5
    w_ih = params_ref[H:H + 1, 0:G]          # (1, 4H)
    bias = params_ref[H + 1:H + 2, 0:G]      # (1, 4H)
    a_scale = params_ref[H + 2:H + 3, 0:G]   # (1, 4H)
    a_off = params_ref[H + 3:H + 4, 0:G]     # (1, 4H)
    fc_w = params_ref[0:H, G:G + 3]          # (H, 3)
    fc_b = params_ref[H:H + 1, G:G + 3]      # (1, 3)

    # Input projection for all timesteps, computed in-kernel and independent of
    # the recurrence (off the serial chain): (seq,1)*(1,4H)+(1,4H) -> (seq,4H).
    xb = t_ref[...] * w_ih + bias

    # h_0 = c_0 = 0 (PyTorch default when no initial state is passed).
    h = jnp.zeros((1, H), jnp.float32)
    c = jnp.zeros((1, H), jnp.float32)

    # seq is a small static constant: fully unroll so every slice index is
    # static and the LLO scheduler sees the whole dependency chain.
    for s in range(seq):
        pre = xb[s:s + 1, :] + jnp.dot(h, w_hh,
                                       preferred_element_type=jnp.float32)  # (1, 4H)
        a = jnp.tanh(pre)             # single EUP push for all four gates
        act = a * a_scale + a_off     # sigmoid for i/f/o lanes, tanh for g lanes
        i_g = act[:, 0 * H:1 * H]
        f_g = act[:, 1 * H:2 * H]
        g_g = act[:, 2 * H:3 * H]
        o_g = act[:, 3 * H:4 * H]
        c = f_g * c + i_g * g_g
        h = o_g * jnp.tanh(c)         # second EUP push

    # fc on the last hidden state: (1,H)@(H,3) + (1,3).
    out_ref[...] = jnp.dot(h, fc_w, preferred_element_type=jnp.float32) + fc_b


def rnn_lppls_forward(t, packed_params, *, hidden=HIDDEN):
    """t: (seq, 1) float32, packed_params from _pack_params -> (3,) float32."""
    seq = t.shape[0]
    t2 = t.reshape(seq, 1).astype(jnp.float32)
    param_bytes = packed_params.shape[0] * packed_params.shape[1] * 4
    cost = pl.CostEstimate(
        flops=2 * seq * hidden * 4 * hidden + 12 * seq * 4 * hidden + 2 * hidden * 3,
        transcendentals=seq * 5 * hidden,
        bytes_accessed=int(param_bytes + seq * 4 + 3 * 4),
    )
    out = pl.pallas_call(
        functools.partial(_lstm_lppls_kernel, H=hidden, seq=seq),
        out_shape=jax.ShapeDtypeStruct((1, 3), jnp.float32),
        in_specs=[
            pl.BlockSpec(memory_space=pltpu.MemorySpace.VMEM),   # packed params
            pl.BlockSpec(memory_space=pltpu.MemorySpace.VMEM),   # t (seq, 1)
        ],
        out_specs=pl.BlockSpec(memory_space=pltpu.MemorySpace.VMEM),
        cost_estimate=cost,
    )(packed_params, t2)
    return out.reshape(3)


def _reference_forward(t, w_ih, w_hh, b_ih, b_hh, fc_w, fc_b):
    """Pure-JAX reference mirroring torch.nn.LSTM + Linear semantics."""
    H = w_hh.shape[1]
    h = jnp.zeros((H,), jnp.float32)
    c = jnp.zeros((H,), jnp.float32)
    for s in range(t.shape[0]):
        x_t = t[s]                                       # (1,)
        gates = w_ih @ x_t + w_hh @ h + b_ih + b_hh      # (4H,)
        i_g = jax.nn.sigmoid(gates[0 * H:1 * H])
        f_g = jax.nn.sigmoid(gates[1 * H:2 * H])
        g_g = jnp.tanh(gates[2 * H:3 * H])
        o_g = jax.nn.sigmoid(gates[3 * H:4 * H])
        c = f_g * c + i_g * g_g
        h = o_g * jnp.tanh(c)
    return fc_w @ h + fc_b                               # (3,)


if __name__ == "__main__":
    H = HIDDEN
    key = jax.random.PRNGKey(0)
    k_t, k1, k2, k3, k4, k5, k6 = jax.random.split(key, 7)

    # Deterministic parameter init (uniform +-1/sqrt(H), like PyTorch LSTM/Linear).
    bound = 1.0 / jnp.sqrt(jnp.float32(H))
    w_ih = jax.random.uniform(k1, (4 * H, 1), jnp.float32, -bound, bound)
    w_hh = jax.random.uniform(k2, (4 * H, H), jnp.float32, -bound, bound)
    b_ih = jax.random.uniform(k3, (4 * H,), jnp.float32, -bound, bound)
    b_hh = jax.random.uniform(k4, (4 * H,), jnp.float32, -bound, bound)
    fc_w = jax.random.uniform(k5, (3, H), jnp.float32, -bound, bound)
    fc_b = jax.random.uniform(k6, (3,), jnp.float32, -bound, bound)

    # Input t: (seq, 1), as consumed by forward (then unsqueezed to batch=1).
    t = jax.random.uniform(k_t, (SEQ, 1), jnp.float32)

    # One-time parameter packing (hoisted out of the per-call path).
    packed = _pack_params(w_ih, w_hh, b_ih, b_hh, fc_w, fc_b)
    packed = jax.block_until_ready(packed)

    out = rnn_lppls_forward(t, packed)
    out = jax.block_until_ready(out)

    ref = _reference_forward(t, w_ih, w_hh, b_ih, b_hh, fc_w, fc_b)
    assert out.shape == (3,)
    assert jnp.allclose(out, ref, atol=1e-5, rtol=1e-5), (out, ref)

    print("KERNEL_OK")
</pallas_src>

<mosaic_0001>
module attributes {stable_mosaic.version = 11 : i64} {
  func.func @_lstm_lppls_kernel(%arg0: memref<24x128xf32, #tpu.memory_space<vmem>>, %arg1: memref<8x1xf32, #tpu.memory_space<vmem>>, %arg2: memref<1x3xf32, #tpu.memory_space<vmem>>) attributes {dimension_semantics = [], scalar_prefetch = 0 : i64, scratch_operands = 0 : i64, tpu.core_type = #tpu.core_type<tc>} {
    %c0 = arith.constant 0 : index
    %c0_0 = arith.constant 0 : index
    %0 = vector.load %arg0[%c0, %c0_0] : memref<24x128xf32, #tpu.memory_space<vmem>>, vector<16x64xf32>
    %c16 = arith.constant 16 : index
    %c0_1 = arith.constant 0 : index
    %1 = vector.load %arg0[%c16, %c0_1] : memref<24x128xf32, #tpu.memory_space<vmem>>, vector<1x64xf32>
    %c17 = arith.constant 17 : index
    %c0_2 = arith.constant 0 : index
    %2 = vector.load %arg0[%c17, %c0_2] : memref<24x128xf32, #tpu.memory_space<vmem>>, vector<1x64xf32>
    %c18 = arith.constant 18 : index
    %c0_3 = arith.constant 0 : index
    %3 = vector.load %arg0[%c18, %c0_3] : memref<24x128xf32, #tpu.memory_space<vmem>>, vector<1x64xf32>
    %c19 = arith.constant 19 : index
    %c0_4 = arith.constant 0 : index
    %4 = vector.load %arg0[%c19, %c0_4] : memref<24x128xf32, #tpu.memory_space<vmem>>, vector<1x64xf32>
    %c0_5 = arith.constant 0 : index
    %c64 = arith.constant 64 : index
    %5 = vector.load %arg0[%c0_5, %c64] : memref<24x128xf32, #tpu.memory_space<vmem>>, vector<16x3xf32>
    %c16_6 = arith.constant 16 : index
    %c64_7 = arith.constant 64 : index
    %6 = vector.load %arg0[%c16_6, %c64_7] : memref<24x128xf32, #tpu.memory_space<vmem>>, vector<1x3xf32>
    %c0_8 = arith.constant 0 : index
    %c0_9 = arith.constant 0 : index
    %7 = vector.load %arg1[%c0_8, %c0_9] : memref<8x1xf32, #tpu.memory_space<vmem>>, vector<8x1xf32>
    %8 = vector.broadcast %7 : vector<8x1xf32> to vector<8x64xf32>
    %9 = vector.broadcast %1 : vector<1x64xf32> to vector<8x64xf32>
    %10 = arith.mulf %8, %9 : vector<8x64xf32>
    %11 = vector.broadcast %2 : vector<1x64xf32> to vector<8x64xf32>
    %12 = arith.addf %10, %11 : vector<8x64xf32>
    %cst = arith.constant 0.000000e+00 : f32
    %13 = vector.broadcast %cst : f32 to vector<1x16xf32>
    %cst_10 = arith.constant 0.000000e+00 : f32
    %14 = vector.broadcast %cst_10 : f32 to vector<1x16xf32>
    %15 = vector.extract_strided_slice %12 {offsets = [0, 0], sizes = [1, 64], strides = [1, 1]} : vector<8x64xf32> to vector<1x64xf32>
    %cst_11 = arith.constant dense<0.000000e+00> : vector<1x64xf32>
    %16 = tpu.matmul %13, %0, %cst_11 {dimension_numbers = #tpu.dot_dimension_numbers<[1], [0], [0], [1], [0, 0, 1, 1], [], []>} : vector<1x16xf32>, vector<16x64xf32>, vector<1x64xf32> -> vector<1x64xf32>
    %17 = arith.addf %15, %16 : vector<1x64xf32>
    %18 = math.tanh %17 : vector<1x64xf32>
    %19 = arith.mulf %18, %3 : vector<1x64xf32>
    %20 = arith.addf %19, %4 : vector<1x64xf32>
    %21 = vector.extract_strided_slice %20 {offsets = [0, 0], sizes = [1, 16], strides = [1, 1]} : vector<1x64xf32> to vector<1x16xf32>
    %22 = vector.extract_strided_slice %20 {offsets = [0, 16], sizes = [1, 16], strides = [1, 1]} : vector<1x64xf32> to vector<1x16xf32>
    %23 = vector.extract_strided_slice %20 {offsets = [0, 32], sizes = [1, 16], strides = [1, 1]} : vector<1x64xf32> to vector<1x16xf32>
    %24 = vector.extract_strided_slice %20 {offsets = [0, 48], sizes = [1, 16], strides = [1, 1]} : vector<1x64xf32> to vector<1x16xf32>
    %25 = arith.mulf %22, %14 : vector<1x16xf32>
    %26 = arith.mulf %21, %23 : vector<1x16xf32>
    %27 = arith.addf %25, %26 : vector<1x16xf32>
    %28 = math.tanh %27 : vector<1x16xf32>
    %29 = arith.mulf %24, %28 : vector<1x16xf32>
    %30 = vector.extract_strided_slice %12 {offsets = [1, 0], sizes = [1, 64], strides = [1, 1]} : vector<8x64xf32> to vector<1x64xf32>
    %cst_12 = arith.constant dense<0.000000e+00> : vector<1x64xf32>
    %31 = tpu.matmul %29, %0, %cst_12 {dimension_numbers = #tpu.dot_dimension_numbers<[1], [0], [0], [1], [0, 0, 1, 1], [], []>} : vector<1x16xf32>, vector<16x64xf32>, vector<1x64xf32> -> vector<1x64xf32>
    %32 = arith.addf %30, %31 : vector<1x64xf32>
    %33 = math.tanh %32 : vector<1x64xf32>
    %34 = arith.mulf %33, %3 : vector<1x64xf32>
    %35 = arith.addf %34, %4 : vector<1x64xf32>
    %36 = vector.extract_strided_slice %35 {offsets = [0, 0], sizes = [1, 16], strides = [1, 1]} : vector<1x64xf32> to vector<1x16xf32>
    %37 = vector.extract_strided_slice %35 {offsets = [0, 16], sizes = [1, 16], strides = [1, 1]} : vector<1x64xf32> to vector<1x16xf32>
    %38 = vector.extract_strided_slice %35 {offsets = [0, 32], sizes = [1, 16], strides = [1, 1]} : vector<1x64xf32> to vector<1x16xf32>
    %39 = vector.extract_strided_slice %35 {offsets = [0, 48], sizes = [1, 16], strides = [1, 1]} : vector<1x64xf32> to vector<1x16xf32>
    %40 = arith.mulf %37, %27 : vector<1x16xf32>
    %41 = arith.mulf %36, %38 : vector<1x16xf32>
    %42 = arith.addf %40, %41 : vector<1x16xf32>
    %43 = math.tanh %42 : vector<1x16xf32>
    %44 = arith.mulf %39, %43 : vector<1x16xf32>
    %45 = vector.extract_strided_slice %12 {offsets = [2, 0], sizes = [1, 64], strides = [1, 1]} : vector<8x64xf32> to vector<1x64xf32>
    %cst_13 = arith.constant dense<0.000000e+00> : vector<1x64xf32>
    %46 = tpu.matmul %44, %0, %cst_13 {dimension_numbers = #tpu.dot_dimension_numbers<[1], [0], [0], [1], [0, 0, 1, 1], [], []>} : vector<1x16xf32>, vector<16x64xf32>, vector<1x64xf32> -> vector<1x64xf32>
    %47 = arith.addf %45, %46 : vector<1x64xf32>
    %48 = math.tanh %47 : vector<1x64xf32>
    %49 = arith.mulf %48, %3 : vector<1x64xf32>
    %50 = arith.addf %49, %4 : vector<1x64xf32>
    %51 = vector.extract_strided_slice %50 {offsets = [0, 0], sizes = [1, 16], strides = [1, 1]} : vector<1x64xf32> to vector<1x16xf32>
    %52 = vector.extract_strided_slice %50 {offsets = [0, 16], sizes = [1, 16], strides = [1, 1]} : vector<1x64xf32> to vector<1x16xf32>
    %53 = vector.extract_strided_slice %50 {offsets = [0, 32], sizes = [1, 16], strides = [1, 1]} : vector<1x64xf32> to vector<1x16xf32>
    %54 = vector.extract_strided_slice %50 {offsets = [0, 48], sizes = [1, 16], strides = [1, 1]} : vector<1x64xf32> to vector<1x16xf32>
    %55 = arith.mulf %52, %42 : vector<1x16xf32>
    %56 = arith.mulf %51, %53 : vector<1x16xf32>
    %57 = arith.addf %55, %56 : vector<1x16xf32>
    %58 = math.tanh %57 : vector<1x16xf32>
    %59 = arith.mulf %54, %58 : vector<1x16xf32>
    %60 = vector.extract_strided_slice %12 {offsets = [3, 0], sizes = [1, 64], strides = [1, 1]} : vector<8x64xf32> to vector<1x64xf32>
    %cst_14 = arith.constant dense<0.000000e+00> : vector<1x64xf32>
    %61 = tpu.matmul %59, %0, %cst_14 {dimension_numbers = #tpu.dot_dimension_numbers<[1], [0], [0], [1], [0, 0, 1, 1], [], []>} : vector<1x16xf32>, vector<16x64xf32>, vector<1x64xf32> -> vector<1x64xf32>
    %62 = arith.addf %60, %61 : vector<1x64xf32>
    %63 = math.tanh %62 : vector<1x64xf32>
    %64 = arith.mulf %63, %3 : vector<1x64xf32>
    %65 = arith.addf %64, %4 : vector<1x64xf32>
    %66 = vector.extract_strided_slice %65 {offsets = [0, 0], sizes = [1, 16], strides = [1, 1]} : vector<1x64xf32> to vector<1x16xf32>
    %67 = vector.extract_strided_slice %65 {offsets = [0, 16], sizes = [1, 16], strides = [1, 1]} : vector<1x64xf32> to vector<1x16xf32>
    %68 = vector.extract_strided_slice %65 {offsets = [0, 32], sizes = [1, 16], strides = [1, 1]} : vector<1x64xf32> to vector<1x16xf32>
    %69 = vector.extract_strided_slice %65 {offsets = [0, 48], sizes = [1, 16], strides = [1, 1]} : vector<1x64xf32> to vector<1x16xf32>
    %70 = arith.mulf %67, %57 : vector<1x16xf32>
    %71 = arith.mulf %66, %68 : vector<1x16xf32>
    %72 = arith.addf %70, %71 : vector<1x16xf32>
    %73 = math.tanh %72 : vector<1x16xf32>
    %74 = arith.mulf %69, %73 : vector<1x16xf32>
    %75 = vector.extract_strided_slice %12 {offsets = [4, 0], sizes = [1, 64], strides = [1, 1]} : vector<8x64xf32> to vector<1x64xf32>
    %cst_15 = arith.constant dense<0.000000e+00> : vector<1x64xf32>
    %76 = tpu.matmul %74, %0, %cst_15 {dimension_numbers = #tpu.dot_dimension_numbers<[1], [0], [0], [1], [0, 0, 1, 1], [], []>} : vector<1x16xf32>, vector<16x64xf32>, vector<1x64xf32> -> vector<1x64xf32>
    %77 = arith.addf %75, %76 : vector<1x64xf32>
    %78 = math.tanh %77 : vector<1x64xf32>
    %79 = arith.mulf %78, %3 : vector<1x64xf32>
    %80 = arith.addf %79, %4 : vector<1x64xf32>
    %81 = vector.extract_strided_slice %80 {offsets = [0, 0], sizes = [1, 16], strides = [1, 1]} : vector<1x64xf32> to vector<1x16xf32>
    %82 = vector.extract_strided_slice %80 {offsets = [0, 16], sizes = [1, 16], strides = [1, 1]} : vector<1x64xf32> to vector<1x16xf32>
    %83 = vector.extract_strided_slice %80 {offsets = [0, 32], sizes = [1, 16], strides = [1, 1]} : vector<1x64xf32> to vector<1x16xf32>
    %84 = vector.extract_strided_slice %80 {offsets = [0, 48], sizes = [1, 16], strides = [1, 1]} : vector<1x64xf32> to vector<1x16xf32>
    %85 = arith.mulf %82, %72 : vector<1x16xf32>
    %86 = arith.mulf %81, %83 : vector<1x16xf32>
    %87 = arith.addf %85, %86 : vector<1x16xf32>
    %88 = math.tanh %87 : vector<1x16xf32>
    %89 = arith.mulf %84, %88 : vector<1x16xf32>
    %90 = vector.extract_strided_slice %12 {offsets = [5, 0], sizes = [1, 64], strides = [1, 1]} : vector<8x64xf32> to vector<1x64xf32>
    %cst_16 = arith.constant dense<0.000000e+00> : vector<1x64xf32>
    %91 = tpu.matmul %89, %0, %cst_16 {dimension_numbers = #tpu.dot_dimension_numbers<[1], [0], [0], [1], [0, 0, 1, 1], [], []>} : vector<1x16xf32>, vector<16x64xf32>, vector<1x64xf32> -> vector<1x64xf32>
    %92 = arith.addf %90, %91 : vector<1x64xf32>
    %93 = math.tanh %92 : vector<1x64xf32>
    %94 = arith.mulf %93, %3 : vector<1x64xf32>
    %95 = arith.addf %94, %4 : vector<1x64xf32>
    %96 = vector.extract_strided_slice %95 {offsets = [0, 0], sizes = [1, 16], strides = [1, 1]} : vector<1x64xf32> to vector<1x16xf32>
    %97 = vector.extract_strided_slice %95 {offsets = [0, 16], sizes = [1, 16], strides = [1, 1]} : vector<1x64xf32> to vector<1x16xf32>
    %98 = vector.extract_strided_slice %95 {offsets = [0, 32], sizes = [1, 16], strides = [1, 1]} : vector<1x64xf32> to vector<1x16xf32>
    %99 = vector.extract_strided_slice %95 {offsets = [0, 48], sizes = [1, 16], strides = [1, 1]} : vector<1x64xf32> to vector<1x16xf32>
    %100 = arith.mulf %97, %87 : vector<1x16xf32>
    %101 = arith.mulf %96, %98 : vector<1x16xf32>
    %102 = arith.addf %100, %101 : vector<1x16xf32>
    %103 = math.tanh %102 : vector<1x16xf32>
    %104 = arith.mulf %99, %103 : vector<1x16xf32>
    %105 = vector.extract_strided_slice %12 {offsets = [6, 0], sizes = [1, 64], strides = [1, 1]} : vector<8x64xf32> to vector<1x64xf32>
    %cst_17 = arith.constant dense<0.000000e+00> : vector<1x64xf32>
    %106 = tpu.matmul %104, %0, %cst_17 {dimension_numbers = #tpu.dot_dimension_numbers<[1], [0], [0], [1], [0, 0, 1, 1], [], []>} : vector<1x16xf32>, vector<16x64xf32>, vector<1x64xf32> -> vector<1x64xf32>
    %107 = arith.addf %105, %106 : vector<1x64xf32>
    %108 = math.tanh %107 : vector<1x64xf32>
    %109 = arith.mulf %108, %3 : vector<1x64xf32>
    %110 = arith.addf %109, %4 : vector<1x64xf32>
    %111 = vector.extract_strided_slice %110 {offsets = [0, 0], sizes = [1, 16], strides = [1, 1]} : vector<1x64xf32> to vector<1x16xf32>
    %112 = vector.extract_strided_slice %110 {offsets = [0, 16], sizes = [1, 16], strides = [1, 1]} : vector<1x64xf32> to vector<1x16xf32>
    %113 = vector.extract_strided_slice %110 {offsets = [0, 32], sizes = [1, 16], strides = [1, 1]} : vector<1x64xf32> to vector<1x16xf32>
    %114 = vector.extract_strided_slice %110 {offsets = [0, 48], sizes = [1, 16], strides = [1, 1]} : vector<1x64xf32> to vector<1x16xf32>
    %115 = arith.mulf %112, %102 : vector<1x16xf32>
    %116 = arith.mulf %111, %113 : vector<1x16xf32>
    %117 = arith.addf %115, %116 : vector<1x16xf32>
    %118 = math.tanh %117 : vector<1x16xf32>
    %119 = arith.mulf %114, %118 : vector<1x16xf32>
    %120 = vector.extract_strided_slice %12 {offsets = [7, 0], sizes = [1, 64], strides = [1, 1]} : vector<8x64xf32> to vector<1x64xf32>
    %cst_18 = arith.constant dense<0.000000e+00> : vector<1x64xf32>
    %121 = tpu.matmul %119, %0, %cst_18 {dimension_numbers = #tpu.dot_dimension_numbers<[1], [0], [0], [1], [0, 0, 1, 1], [], []>} : vector<1x16xf32>, vector<16x64xf32>, vector<1x64xf32> -> vector<1x64xf32>
    %122 = arith.addf %120, %121 : vector<1x64xf32>
    %123 = math.tanh %122 : vector<1x64xf32>
    %124 = arith.mulf %123, %3 : vector<1x64xf32>
    %125 = arith.addf %124, %4 : vector<1x64xf32>
    %126 = vector.extract_strided_slice %125 {offsets = [0, 0], sizes = [1, 16], strides = [1, 1]} : vector<1x64xf32> to vector<1x16xf32>
    %127 = vector.extract_strided_slice %125 {offsets = [0, 16], sizes = [1, 16], strides = [1, 1]} : vector<1x64xf32> to vector<1x16xf32>
    %128 = vector.extract_strided_slice %125 {offsets = [0, 32], sizes = [1, 16], strides = [1, 1]} : vector<1x64xf32> to vector<1x16xf32>
    %129 = vector.extract_strided_slice %125 {offsets = [0, 48], sizes = [1, 16], strides = [1, 1]} : vector<1x64xf32> to vector<1x16xf32>
    %130 = arith.mulf %127, %117 : vector<1x16xf32>
    %131 = arith.mulf %126, %128 : vector<1x16xf32>
    %132 = arith.addf %130, %131 : vector<1x16xf32>
    %133 = math.tanh %132 : vector<1x16xf32>
    %134 = arith.mulf %129, %133 : vector<1x16xf32>
    %cst_19 = arith.constant dense<0.000000e+00> : vector<1x3xf32>
    %135 = tpu.matmul %134, %5, %cst_19 {dimension_numbers = #tpu.dot_dimension_numbers<[1], [0], [0], [1], [0, 0, 1, 1], [], []>} : vector<1x16xf32>, vector<16x3xf32>, vector<1x3xf32> -> vector<1x3xf32>
    %136 = arith.addf %135, %6 : vector<1x3xf32>
    %c0_20 = arith.constant 0 : index
    %c0_21 = arith.constant 0 : index
    %137 = vector.load %arg2[%c0_20, %c0_21] : memref<1x3xf32, #tpu.memory_space<vmem>>, vector<1x3xf32>
    tpu.vector_store %arg2[%c0_20, %c0_21], %136 {strides = array<i32>} : memref<1x3xf32, #tpu.memory_space<vmem>>, vector<1x3xf32>,
    return
  }
}

</mosaic_0001>

<llo_original>
// kernel: tpu_custom_call.1
$region0: #{tpu_custom_call.1}
  #allocation0 [shape = 'u32[]', space=smem, size = 0x4, offset = 0x4, fixed_abs, tag = 'smem constant byte address 0x4 - core index']
  #allocation1 [shape = 'u32[72,128]{1,0:T(1,128)}', space=vmem, size = 0x9000, scoped, tag = 'internal scratch']
  %s0 = inlined_call_operand.hbm [shape: f32[24,128], index: 0, kind: input, shape index: {}]
  %s1 = inlined_call_operand.vmem [shape: f32[8,1], index: 1, kind: input, shape index: {}]
  %s2 = inlined_call_operand.hbm [shape: f32[1,3], index: 2, kind: output, shape index: {}]
  %s3 = sld [smem:[#allocation0]]
  $region22: #{tpu_custom_call.1} parent=0
    _
  %s5 = ssub.s32 1, %s3
  %s6 = scalar_select 0, %s5, %s3
  $region1: #{tpu_custom_call.1} parent=0
    #allocation2 [shape = 'u8[12288]{0}', space=vmem, size = 0x3000, scoped, tag = 'input window, operand 0, single buffered']
    #allocation3 [shape = 's32[1]{0}', space=sflag, size = 0x4, scoped, tag = 'scoped memory for tpu_custom_call.1']
    #allocation4 [shape = 's32[1]{0}', space=sflag, size = 0x4, scoped, tag = 'scoped memory for tpu_custom_call.1']
    #allocation5 [shape = 'u8[512]{0}', space=vmem, size = 0x400, scoped, tag = 'output window, operand 0, single buffered']
    %7 = vsyncpa [#allocation3], 0
    %8 = vsyncpa [#allocation4], 0
    // Predicated region
    $region2: #{tpu_custom_call.1} parent=1 // pred_check
      _
    $region3: #{tpu_custom_call.1} parent=1 // pred_check_branch
      %10 = sbr.rel (0) target = $region5
    $region4: #{tpu_custom_call.1} parent=1 // pred_region
      %12 = vsyncadd [#allocation3], 0
      %s13 = sshll.u32 %s0, 4
      %s14 = int_to_ptr.hbm [resolvable:$true] %s13
      %s15 = sshll.u32 [#allocation2], 4
      %s16 = int_to_ptr.vmem [resolvable:$true] %s15
      %21 = dma.hbm_to_vmem [thread:$0]  %s14, 384, %s16, [#allocation3], 128, 128, 8
    $region5: #{tpu_custom_call.1} parent=1 // pred_fallthru
      _
    // Predicated region
    $region6: #{tpu_custom_call.1} parent=1 // pred_check
      _
    $region7: #{tpu_custom_call.1} parent=1 // pred_check_branch
      %23 = sbr.rel (0) target = $region9
    $region8: #{tpu_custom_call.1} parent=1 // pred_region
      _
    $region9: #{tpu_custom_call.1} parent=1 // pred_fallthru
      _
    // Predicated region
    $region10: #{tpu_custom_call.1} parent=1 // pred_check
      _
    $region11: #{tpu_custom_call.1} parent=1 // pred_check_branch
      %25 = sbr.rel (0) target = $region13
    $region12: #{tpu_custom_call.1} parent=1 // pred_region
      %27 = dma.done [#allocation3], 384
    $region13: #{tpu_custom_call.1} parent=1 // pred_fallthru
      _
    %v28 = vld [vmem:[#allocation2] sm:$0xff]
    %v29 = vld [vmem:[#allocation2 + $0x8] sm:$0xff]
    %v30 = vld [vmem:[#allocation2 + $0x10] sm:$0x1]
    %v31 = vld [vmem:[#allocation2 + $0x11] sm:$0x1]
    %v32 = vld [vmem:[#allocation2 + $0x12] sm:$0x1]
    %v33 = vld [vmem:[#allocation2 + $0x13] sm:$0x1]
    %v34 = vld [vmem:[%s1] sm:$0xff]
    %36 = vset.pattern.permute.xlu0 0
    %37 = vperm.xlu0 %36, %v34
    %v38 = vpop.permute.xlu0 %37
    %v40 = vperm.slane %v30, 0
    %v41 = vmul.f32 %v38, %v40
    %v42 = vperm.slane %v31, 0
    %v43 = vadd.f32 %v41, %v42
    %vm44 = vcmask 130048
    %v46 = vsel %vm44, 0.0, 0
    %48 = vmatpush.msra.mxu0 0.0
    %49 = vmatpush.msra.mxu0 0.0
    %50 = vmatpush.msra.mxu0 0.0
    %51 = vmatpush.msra.mxu0 0.0
    %52 = vmatpush.msra.mxu0 0.0
    %53 = vmatpush.msra.mxu0 0.0
    %54 = vmatpush.msra.mxu0 0.0
    %55 = vmatpush.msra.mxu0 0.0
    %56 = vmatpush.msra.mxu0 0.0
    %57 = vmatpush.msra.mxu0 0.0
    %58 = vmatpush.msra.mxu0 0.0
    %59 = vmatpush.msra.mxu0 0.0
    %60 = vmatpush.msra.mxu0 0.0
    %61 = vmatpush.msra.mxu0 0.0
    %62 = vmatpush.msra.mxu0 %v29
    %63 = vmatpush.msra.mxu0 %v28
    %64 = vmatmul.f32.gmra.mxu0 %v46
    %v65 = vpop.f32.mrf.mxu0
    %v66 = vadd.f32 0.0, %v65
    %67 = vdwg.mxu0
    %v68 = vadd.f32 %v43, %v66
    %v69 = vtanh.pop %v68
    %v70 = vmul.f32 %v69, %v32
    %v71 = vadd.f32 %v70, %v33
    %v72 = vmul.f32 %v71, 0.0
    %74 = vrot.lane.b32.xlu0 %v71, 96
    %v75 = vpop.permute.xlu0 %74
    %v77 = vmul.f32 %v71, %v75
    %79 = vrot.lane.b32.xlu0 %v77, 16
    %v80 = vpop.permute.xlu0 %79
    %v82 = vadd.f32 %v72, %v80
    %v83 = vtanh.pop %v82
    %85 = vrot.lane.b32.xlu0 %v83, 32
    %v86 = vpop.permute.xlu0 %85
    %v88 = vmul.f32 %v71, %v86
    %90 = vrot.lane.b32.xlu0 %v88, 80
    %v91 = vpop.permute.xlu0 %90
    %v92 = vsel %vm44, %v91, 0
    %94 = vmatpush.msra.mxu0 0.0
    %95 = vmatpush.msra.mxu0 0.0
    %96 = vmatpush.msra.mxu0 0.0
    %97 = vmatpush.msra.mxu0 0.0
    %98 = vmatpush.msra.mxu0 0.0
    %99 = vmatpush.msra.mxu0 0.0
    %100 = vmatpush.msra.mxu0 0.0
    %101 = vmatpush.msra.mxu0 0.0
    %102 = vmatpush.msra.mxu0 0.0
    %103 = vmatpush.msra.mxu0 0.0
    %104 = vmatpush.msra.mxu0 0.0
    %105 = vmatpush.msra.mxu0 0.0
    %106 = vmatpush.msra.mxu0 0.0
    %107 = vmatpush.msra.mxu0 0.0
    %108 = vmatpush.msra.mxu0 %v29
    %109 = vmatpush.msra.mxu0 %v28
    %110 = vmatmul.f32.gmra.mxu0 %v92
    %v111 = vpop.f32.mrf.mxu0
    %v112 = vadd.f32 0.0, %v111
    %113 = vdwg.mxu0
    %v115 = vrot.slane %v112, 7
    %v117 = vadd.f32 %v43, %v115
    %v118 = vtanh.pop %v117
    %v120 = vrot.slane %v32, 7
    %v122 = vmul.f32 %v118, %v120
    %v124 = vrot.slane %v33, 7
    %v126 = vadd.f32 %v122, %v124
    %v128 = vrot.slane %v82, 7
    %v130 = vmul.f32 %v126, %v128
    %132 = vrot.lane.b32.xlu0 %v126, 96
    %v133 = vpop.permute.xlu0 %132
    %v135 = vmul.f32 %v126, %v133
    %137 = vrot.lane.b32.xlu0 %v135, 16
    %v138 = vpop.permute.xlu0 %137
    %v140 = vadd.f32 %v130, %v138
    %v141 = vtanh.pop %v140
    %143 = vrot.lane.b32.xlu0 %v141, 32
    %v144 = vpop.permute.xlu0 %143
    %v146 = vmul.f32 %v126, %v144
    %v148 = vrot.slane %v146, 1
    %149 = vrot.lane.b32.xlu0 %v148, 80
    %v150 = vpop.permute.xlu0 %149
    %v151 = vsel %vm44, %v150, 0
    %153 = vmatpush.msra.mxu0 0.0
    %154 = vmatpush.msra.mxu0 0.0
    %155 = vmatpush.msra.mxu0 0.0
    %156 = vmatpush.msra.mxu0 0.0
    %157 = vmatpush.msra.mxu0 0.0
    %158 = vmatpush.msra.mxu0 0.0
    %159 = vmatpush.msra.mxu0 0.0
    %160 = vmatpush.msra.mxu0 0.0
    %161 = vmatpush.msra.mxu0 0.0
    %162 = vmatpush.msra.mxu0 0.0
    %163 = vmatpush.msra.mxu0 0.0
    %164 = vmatpush.msra.mxu0 0.0
    %165 = vmatpush.msra.mxu0 0.0
    %166 = vmatpush.msra.mxu0 0.0
    %167 = vmatpush.msra.mxu0 %v29
    %168 = vmatpush.msra.mxu0 %v28
    %169 = vmatmul.f32.gmra.mxu0 %v151
    %v170 = vpop.f32.mrf.mxu0
    %v171 = vadd.f32 0.0, %v170
    %172 = vdwg.mxu0
    %v174 = vrot.slane %v171, 6
    %v176 = vadd.f32 %v43, %v174
    %v177 = vtanh.pop %v176
    %v178 = vrot.slane %v32, 6
    %v180 = vmul.f32 %v177, %v178
    %v181 = vrot.slane %v33, 6
    %v183 = vadd.f32 %v180, %v181
    %v185 = vrot.slane %v140, 7
    %v187 = vmul.f32 %v183, %v185
    %189 = vrot.lane.b32.xlu0 %v183, 96
    %v190 = vpop.permute.xlu0 %189
    %v192 = vmul.f32 %v183, %v190
    %194 = vrot.lane.b32.xlu0 %v192, 16
    %v195 = vpop.permute.xlu0 %194
    %v197 = vadd.f32 %v187, %v195
    %v198 = vtanh.pop %v197
    %200 = vrot.lane.b32.xlu0 %v198, 32
    %v201 = vpop.permute.xlu0 %200
    %v203 = vmul.f32 %v183, %v201
    %v205 = vrot.slane %v203, 2
    %206 = vrot.lane.b32.xlu0 %v205, 80
    %v207 = vpop.permute.xlu0 %206
    %v208 = vsel %vm44, %v207, 0
    %210 = vmatpush.msra.mxu0 0.0
    %211 = vmatpush.msra.mxu0 0.0
    %212 = vmatpush.msra.mxu0 0.0
    %213 = vmatpush.msra.mxu0 0.0
    %214 = vmatpush.msra.mxu0 0.0
    %215 = vmatpush.msra.mxu0 0.0
    %216 = vmatpush.msra.mxu0 0.0
    %217 = vmatpush.msra.mxu0 0.0
    %218 = vmatpush.msra.mxu0 0.0
    %219 = vmatpush.msra.mxu0 0.0
    %220 = vmatpush.msra.mxu0 0.0
    %221 = vmatpush.msra.mxu0 0.0
    %222 = vmatpush.msra.mxu0 0.0
    %223 = vmatpush.msra.mxu0 0.0
    %224 = vmatpush.msra.mxu0 %v29
    %225 = vmatpush.msra.mxu0 %v28
    %226 = vmatmul.f32.gmra.mxu0 %v208
    %v227 = vpop.f32.mrf.mxu0
    %v228 = vadd.f32 0.0, %v227
    %229 = vdwg.mxu0
    %v231 = vrot.slane %v228, 5
    %v233 = vadd.f32 %v43, %v231
    %v234 = vtanh.pop %v233
    %v235 = vrot.slane %v32, 5
    %v237 = vmul.f32 %v234, %v235
    %v238 = vrot.slane %v33, 5
    %v240 = vadd.f32 %v237, %v238
    %v242 = vrot.slane %v197, 7
    %v244 = vmul.f32 %v240, %v242
    %246 = vrot.lane.b32.xlu0 %v240, 96
    %v247 = vpop.permute.xlu0 %246
    %v249 = vmul.f32 %v240, %v247
    %251 = vrot.lane.b32.xlu0 %v249, 16
    %v252 = vpop.permute.xlu0 %251
    %v254 = vadd.f32 %v244, %v252
    %v255 = vtanh.pop %v254
    %257 = vrot.lane.b32.xlu0 %v255, 32
    %v258 = vpop.permute.xlu0 %257
    %v260 = vmul.f32 %v240, %v258
    %v262 = vrot.slane %v260, 3
    %263 = vrot.lane.b32.xlu0 %v262, 80
    %v264 = vpop.permute.xlu0 %263
    %v265 = vsel %vm44, %v264, 0
    %267 = vmatpush.msra.mxu0 0.0
    %268 = vmatpush.msra.mxu0 0.0
    %269 = vmatpush.msra.mxu0 0.0
    %270 = vmatpush.msra.mxu0 0.0
    %271 = vmatpush.msra.mxu0 0.0
    %272 = vmatpush.msra.mxu0 0.0
    %273 = vmatpush.msra.mxu0 0.0
    %274 = vmatpush.msra.mxu0 0.0
    %275 = vmatpush.msra.mxu0 0.0
    %276 = vmatpush.msra.mxu0 0.0
    %277 = vmatpush.msra.mxu0 0.0
    %278 = vmatpush.msra.mxu0 0.0
    %279 = vmatpush.msra.mxu0 0.0
    %280 = vmatpush.msra.mxu0 0.0
    %281 = vmatpush.msra.mxu0 %v29
    %282 = vmatpush.msra.mxu0 %v28
    %283 = vmatmul.f32.gmra.mxu0 %v265
    %v284 = vpop.f32.mrf.mxu0
    %v285 = vadd.f32 0.0, %v284
    %286 = vdwg.mxu0
    %v288 = vrot.slane %v285, 4
    %v290 = vadd.f32 %v43, %v288
    %v291 = vtanh.pop %v290
    %v292 = vrot.slane %v32, 4
    %v294 = vmul.f32 %v291, %v292
    %v295 = vrot.slane %v33, 4
    %v297 = vadd.f32 %v294, %v295
    %v299 = vrot.slane %v254, 7
    %v301 = vmul.f32 %v297, %v299
    %303 = vrot.lane.b32.xlu0 %v297, 96
    %v304 = vpop.permute.xlu0 %303
    %v306 = vmul.f32 %v297, %v304
    %308 = vrot.lane.b32.xlu0 %v306, 16
    %v309 = vpop.permute.xlu0 %308
    %v311 = vadd.f32 %v301, %v309
    %v312 = vtanh.pop %v311
    %314 = vrot.lane.b32.xlu0 %v312, 32
    %v315 = vpop.permute.xlu0 %314
    %v317 = vmul.f32 %v297, %v315
    %v319 = vrot.slane %v317, 4
    %320 = vrot.lane.b32.xlu0 %v319, 80
    %v321 = vpop.permute.xlu0 %320
    %v322 = vsel %vm44, %v321, 0
    %324 = vmatpush.msra.mxu0 0.0
    %325 = vmatpush.msra.mxu0 0.0
    %326 = vmatpush.msra.mxu0 0.0
    %327 = vmatpush.msra.mxu0 0.0
    %328 = vmatpush.msra.mxu0 0.0
    %329 = vmatpush.msra.mxu0 0.0
    %330 = vmatpush.msra.mxu0 0.0
    %331 = vmatpush.msra.mxu0 0.0
    %332 = vmatpush.msra.mxu0 0.0
    %333 = vmatpush.msra.mxu0 0.0
    %334 = vmatpush.msra.mxu0 0.0
    %335 = vmatpush.msra.mxu0 0.0
    %336 = vmatpush.msra.mxu0 0.0
    %337 = vmatpush.msra.mxu0 0.0
    %338 = vmatpush.msra.mxu0 %v29
    %339 = vmatpush.msra.mxu0 %v28
    %340 = vmatmul.f32.gmra.mxu0 %v322
    %v341 = vpop.f32.mrf.mxu0
    %v342 = vadd.f32 0.0, %v341
    %343 = vdwg.mxu0
    %v345 = vrot.slane %v342, 3
    %v347 = vadd.f32 %v43, %v345
    %v348 = vtanh.pop %v347
    %v349 = vrot.slane %v32, 3
    %v351 = vmul.f32 %v348, %v349
    %v352 = vrot.slane %v33, 3
    %v354 = vadd.f32 %v351, %v352
    %v356 = vrot.slane %v311, 7
    %v358 = vmul.f32 %v354, %v356
    %360 = vrot.lane.b32.xlu0 %v354, 96
    %v361 = vpop.permute.xlu0 %360
    %v363 = vmul.f32 %v354, %v361
    %365 = vrot.lane.b32.xlu0 %v363, 16
    %v366 = vpop.permute.xlu0 %365
    %v368 = vadd.f32 %v358, %v366
    %v369 = vtanh.pop %v368
    %371 = vrot.lane.b32.xlu0 %v369, 32
    %v372 = vpop.permute.xlu0 %371
    %v374 = vmul.f32 %v354, %v372
    %v376 = vrot.slane %v374, 5
    %377 = vrot.lane.b32.xlu0 %v376, 80
    %v378 = vpop.permute.xlu0 %377
    %v379 = vsel %vm44, %v378, 0
    %381 = vmatpush.msra.mxu0 0.0
    %382 = vmatpush.msra.mxu0 0.0
    %383 = vmatpush.msra.mxu0 0.0
    %384 = vmatpush.msra.mxu0 0.0
    %385 = vmatpush.msra.mxu0 0.0
    %386 = vmatpush.msra.mxu0 0.0
    %387 = vmatpush.msra.mxu0 0.0
    %388 = vmatpush.msra.mxu0 0.0
    %389 = vmatpush.msra.mxu0 0.0
    %390 = vmatpush.msra.mxu0 0.0
    %391 = vmatpush.msra.mxu0 0.0
    %392 = vmatpush.msra.mxu0 0.0
    %393 = vmatpush.msra.mxu0 0.0
    %394 = vmatpush.msra.mxu0 0.0
    %395 = vmatpush.msra.mxu0 %v29
    %396 = vmatpush.msra.mxu0 %v28
    %397 = vmatmul.f32.gmra.mxu0 %v379
    %v398 = vpop.f32.mrf.mxu0
    %v399 = vadd.f32 0.0, %v398
    %400 = vdwg.mxu0
    %v402 = vrot.slane %v399, 2
    %v404 = vadd.f32 %v43, %v402
    %v405 = vtanh.pop %v404
    %v406 = vrot.slane %v32, 2
    %v408 = vmul.f32 %v405, %v406
    %v409 = vrot.slane %v33, 2
    %v411 = vadd.f32 %v408, %v409
    %v413 = vrot.slane %v368, 7
    %v415 = vmul.f32 %v411, %v413
    %417 = vrot.lane.b32.xlu0 %v411, 96
    %v418 = vpop.permute.xlu0 %417
    %v420 = vmul.f32 %v411, %v418
    %422 = vrot.lane.b32.xlu0 %v420, 16
    %v423 = vpop.permute.xlu0 %422
    %v425 = vadd.f32 %v415, %v423
    %v426 = vtanh.pop %v425
    %428 = vrot.lane.b32.xlu0 %v426, 32
    %v429 = vpop.permute.xlu0 %428
    %v431 = vmul.f32 %v411, %v429
    %v433 = vrot.slane %v431, 6
    %434 = vrot.lane.b32.xlu0 %v433, 80
    %v435 = vpop.permute.xlu0 %434
    %v436 = vsel %vm44, %v435, 0
    %438 = vmatpush.msra.mxu0 0.0
    %439 = vmatpush.msra.mxu0 0.0
    %440 = vmatpush.msra.mxu0 0.0
    %441 = vmatpush.msra.mxu0 0.0
    %442 = vmatpush.msra.mxu0 0.0
    %443 = vmatpush.msra.mxu0 0.0
    %444 = vmatpush.msra.mxu0 0.0
    %445 = vmatpush.msra.mxu0 0.0
    %446 = vmatpush.msra.mxu0 0.0
    %447 = vmatpush.msra.mxu0 0.0
    %448 = vmatpush.msra.mxu0 0.0
    %449 = vmatpush.msra.mxu0 0.0
    %450 = vmatpush.msra.mxu0 0.0
    %451 = vmatpush.msra.mxu0 0.0
    %452 = vmatpush.msra.mxu0 %v29
    %453 = vmatpush.msra.mxu0 %v28
    %454 = vmatmul.f32.gmra.mxu0 %v436
    %v455 = vpop.f32.mrf.mxu0
    %v456 = vadd.f32 0.0, %v455
    %457 = vdwg.mxu0
    %v459 = vrot.slane %v456, 1
    %v461 = vadd.f32 %v43, %v459
    %v462 = vtanh.pop %v461
    %v463 = vrot.slane %v32, 1
    %v465 = vmul.f32 %v462, %v463
    %v466 = vrot.slane %v33, 1
    %v468 = vadd.f32 %v465, %v466
    %v470 = vrot.slane %v425, 7
    %v472 = vmul.f32 %v468, %v470
    %474 = vrot.lane.b32.xlu0 %v468, 96
    %v475 = vpop.permute.xlu0 %474
    %v477 = vmul.f32 %v468, %v475
    %479 = vrot.lane.b32.xlu0 %v477, 16
    %v480 = vpop.permute.xlu0 %479
    %v482 = vadd.f32 %v472, %v480
    %v483 = vtanh.pop %v482
    %485 = vrot.lane.b32.xlu0 %v483, 32
    %v486 = vpop.permute.xlu0 %485
    %v488 = vmul.f32 %v468, %v486
    %v490 = vrot.slane %v488, 7
    %491 = vrot.lane.b32.xlu0 %v490, 80
    %v492 = vpop.permute.xlu0 %491
    %495 = vrot.lane.b32.xlu0 %v28, 64
    %v496 = vpop.permute.xlu0 %495
    %497 = vrot.lane.b32.xlu0 %v29, 64
    %v498 = vpop.permute.xlu0 %497
    %502 = vrot.lane.b32.xlu0 %v30, 64
    %v503 = vpop.permute.xlu0 %502
    %v505 = vsel %vm44, %v492, 0
    %507 = vmatpush.msra.mxu0 0.0
    %508 = vmatpush.msra.mxu0 0.0
    %509 = vmatpush.msra.mxu0 0.0
    %510 = vmatpush.msra.mxu0 0.0
    %511 = vmatpush.msra.mxu0 0.0
    %512 = vmatpush.msra.mxu0 0.0
    %513 = vmatpush.msra.mxu0 0.0
    %514 = vmatpush.msra.mxu0 0.0
    %515 = vmatpush.msra.mxu0 0.0
    %516 = vmatpush.msra.mxu0 0.0
    %517 = vmatpush.msra.mxu0 0.0
    %518 = vmatpush.msra.mxu0 0.0
    %519 = vmatpush.msra.mxu0 0.0
    %520 = vmatpush.msra.mxu0 0.0
    %521 = vmatpush.msra.mxu0 %v498
    %522 = vmatpush.msra.mxu0 %v496
    %523 = vmatmul.f32.gmra.mxu0 %v505
    %v524 = vpop.f32.mrf.mxu0
    %v525 = vadd.f32 %v503, %v524
    %526 = vdwg.mxu0
    %vm527 = vcmask 16384
    %528 = vst.msk [vmem:[#allocation5] sm:$0x1] %vm527, %v525
    // Predicated region
    $region14: #{tpu_custom_call.1} parent=1 // pred_check
      _
    $region15: #{tpu_custom_call.1} parent=1 // pred_check_branch
      %530 = sbr.rel (0) target = $region17
    $region16: #{tpu_custom_call.1} parent=1 // pred_region
      %532 = vsyncadd [#allocation4], 0
      %s534 = sshll.u32 [#allocation5], 4
      %s535 = int_to_ptr.vmem [resolvable:$true] %s534
      %s536 = sshll.u32 %s2, 4
      %s537 = int_to_ptr.hbm [resolvable:$true] %s536
      %539 = dma.vmem_to_hbm [thread:$0]  %s535, 16, %s537, [#allocation4]
    $region17: #{tpu_custom_call.1} parent=1 // pred_fallthru
      _
    // Predicated region
    $region18: #{tpu_custom_call.1} parent=1 // pred_check
      _
    $region19: #{tpu_custom_call.1} parent=1 // pred_check_branch
      %541 = sbr.rel (0) target = $region21
    $region20: #{tpu_custom_call.1} parent=1 // pred_region
      %543 = dma.done [#allocation4], 16
    $region21: #{tpu_custom_call.1} parent=1 // pred_fallthru
      _
    %544 = vsyncpa [#allocation3], 1
    %545 = vsyncpa [#allocation4], 1

</llo_original>
